<compile_context>
chip_gen: v5e
topology: v5e:2x2
jax: 0.10.0
libtpu: 0.0.40
codegen_flags: <defaults>
</compile_context>

<pallas_src>
import math
import functools

import jax
import jax.numpy as jnp
from jax import lax
from jax.experimental import pallas as pl
from jax.experimental.pallas import tpu as pltpu


def make_pe_table(d_model: int, max_len: int = 1000) -> jnp.ndarray:
    """2-D view (max_len, d_model) of the module's `pe` buffer ((max_len, 1, d_model))."""
    position = jnp.arange(max_len, dtype=jnp.float32)[:, None]                      # (max_len, 1)
    div_term = jnp.exp(
        jnp.arange(0, d_model, 2, dtype=jnp.float32) * (-math.log(10000.0) / d_model)
    )                                                                               # (d_model//2,)
    pe = jnp.zeros((max_len, d_model), dtype=jnp.float32)
    pe = pe.at[:, 0::2].set(jnp.sin(position * div_term))
    pe = pe.at[:, 1::2].set(jnp.cos(position * div_term))
    return pe


def _replicate_lanes(block: jnp.ndarray, batch: int) -> jnp.ndarray:
    """Replicate (T, D) -> (T, batch*D) along lanes with O(log batch) concats.

    Near-free vreg reuse when D % 128 == 0; lane shifts through the XLU
    otherwise (small tiles only in that regime).
    """
    if batch <= 1:
        return block
    out = block
    n = 1
    while 2 * n <= batch:
        out = jnp.concatenate([out, out], axis=-1)
        n *= 2
    if n < batch:
        out = jnp.concatenate([out] + [block] * (batch - n), axis=-1)
    return out


def _pe_kernel(seed_ref, x_ref, pe_ref, o_ref, *, batch: int, tile_s: int,
               dropout_p: float, training: bool, compute_dtype):
    # Positional-encoding slab for this seq tile, replicated across the batch
    # along the lane dimension so the add stays fully dense.
    pe_tile = _replicate_lanes(pe_ref[...], batch)            # (TILE_S, B*D)

    # Add in the compute dtype (f32 by default; bf16 for bf16 inputs).
    y = x_ref[...].astype(compute_dtype) + pe_tile

    if (not training) or dropout_p <= 0.0:
        o_ref[...] = y.astype(o_ref.dtype)
        return

    if dropout_p >= 1.0:
        # Everything dropped; avoid the 1/(1-p) = inf scale.
        o_ref[...] = jnp.zeros(o_ref.shape, o_ref.dtype)
        return

    shape = y.shape                                           # (TILE_S, B*D)
    # Counter-based hash PRNG: unique *global* (row, col) per element, so the
    # mask does not depend on the tiling and every tile gets distinct bits.
    row = lax.broadcasted_iota(jnp.int32, shape, 0) + pl.program_id(0) * tile_s
    col = lax.broadcasted_iota(jnp.int32, shape, 1)
    seed_mix = seed_ref[0].astype(jnp.uint32) * jnp.uint32(0x9E3779B1)   # scalar, hoisted
    h = (row.astype(jnp.uint32) * jnp.uint32(0x85EBCA77)
         + col.astype(jnp.uint32) * jnp.uint32(0xC2B2AE3D)
         + seed_mix)
    # Shortened avalanche (xorshift-mul-xorshift): ~5 VALU ops vs 8 for the
    # full murmur fmix32 used previously -- the training path is VALU-bound
    # on v6e/v7x, so fewer ops/element keeps it nearer the memory roofline.
    h = h ^ (h >> 16)
    h = h * jnp.uint32(0x7FEB352D)
    h = h ^ (h >> 15)

    # Integer-threshold compare on the top 31 bits (signed-safe on TPU):
    # keep with probability 1 - p, scale kept values by 1/(1-p).
    thresh = jnp.int32(min(int(round(dropout_p * (1 << 31))), (1 << 31) - 1))
    keep = (h >> 1).astype(jnp.int32) >= thresh
    scale = jnp.asarray(1.0 / (1.0 - dropout_p), dtype=y.dtype)
    y = jnp.where(keep, y * scale, jnp.zeros_like(y))

    o_ref[...] = y.astype(o_ref.dtype)


def _choose_tile_s(seq_len: int, per_row_bytes: int, vmem_budget_bytes: int,
                   sublane_align: int, min_tiles: int) -> int:
    """Largest sublane-aligned seq tile fitting the VMEM budget.

    per_row_bytes accounts for the double-buffered x/out DMA tiles *and* the
    in-kernel temporaries.  When seq_len can be split with alignment, keep at
    least `min_tiles` grid steps so ("parallel",) can shard across both v7x
    TensorCores instead of serializing the whole kernel onto one TC.
    """
    t = max(sublane_align, vmem_budget_bytes // max(1, per_row_bytes))
    if min_tiles > 1 and seq_len >= min_tiles * sublane_align:
        t = min(t, -(-seq_len // min_tiles))          # ceil(seq_len / min_tiles)
    if t >= seq_len:
        return seq_len                                # full-extent block is always legal
    return max(sublane_align, (t // sublane_align) * sublane_align)


def positional_encoding(x: jnp.ndarray, pe2d: jnp.ndarray, *, dropout_p: float = 0.1,
                        training: bool = False, seed: int = 0,
                        vmem_budget_bytes: int = 32 << 20,
                        vmem_limit_bytes: int = 48 << 20,
                        min_seq_tiles: int = 2,
                        compute_dtype=None) -> jnp.ndarray:
    """x: [seq_len, batch, d_model]; pe2d: [max_len, d_model] (float32 buffer)."""
    S, B, D = x.shape

    if compute_dtype is None:
        # bf16 inputs compute in bf16 (halves vreg pressure / VPU work on
        # v6e/v7x).  Pass compute_dtype=jnp.float32 explicitly on v5e (no
        # bf16 VPU) if desired.
        compute_dtype = jnp.bfloat16 if x.dtype == jnp.bfloat16 else jnp.float32

    pe_sl = pe2d[:S].astype(compute_dtype)            # (S, D), trace-time slice + cast (hoisted)
    x2d = x.reshape(S, B * D)                         # free: contiguous reshape, lane-dense
    # Note: B*D should ideally be a multiple of 128; if smaller (tiny demo
    # shapes) stores become masked vst.msk and lanes are underused.

    sublane_align = 16 if x.dtype == jnp.bfloat16 else 8
    row_bytes = B * D * x.dtype.itemsize
    # VMEM per seq row per pipeline step:
    #   4 * row_bytes          -> 2x double-buffered x tile + 2x out tile (DMA)
    #   temps * B*D*4          -> in-kernel temporaries (y, replicated pe, u32
    #                             hash, iotas, keep mask) at 32-bit width.
    temps = 5 if (training and 0.0 < dropout_p < 1.0) else 2
    per_row_bytes = 4 * row_bytes + temps * B * D * 4
    tile_s = _choose_tile_s(S, per_row_bytes, vmem_budget_bytes, sublane_align,
                            min_seq_tiles)
    grid = (pl.cdiv(S, tile_s),)

    seed_arr = jnp.atleast_1d(jnp.asarray(seed, dtype=jnp.int32))

    kernel = functools.partial(
        _pe_kernel, batch=B, tile_s=tile_s,
        dropout_p=float(dropout_p), training=bool(training),
        compute_dtype=compute_dtype,
    )

    out2d = pl.pallas_call(
        kernel,
        out_shape=jax.ShapeDtypeStruct((S, B * D), x.dtype),
        grid=grid,
        in_specs=[
            pl.BlockSpec(memory_space=pltpu.MemorySpace.SMEM),        # dropout seed scalar
            pl.BlockSpec((tile_s, B * D), lambda i: (i, 0)),          # x tile (lane/sublane dense)
            pl.BlockSpec((tile_s, D), lambda i: (i, 0)),              # pe tile (small)
        ],
        out_specs=pl.BlockSpec((tile_s, B * D), lambda i: (i, 0)),
        compiler_params=pltpu.CompilerParams(
            dimension_semantics=("parallel",),                        # shard seq tiles across TCs
            vmem_limit_bytes=int(vmem_limit_bytes),                   # explicit; < v7x 64 MiB physical
        ),
    )(seed_arr, x2d, pe_sl)

    return out2d.reshape(S, B, D)


if __name__ == "__main__":
    seq_len, batch, d_model = 8, 2, 32
    max_len = 1000
    dropout_p = 0.1

    key = jax.random.PRNGKey(0)
    x = jax.random.normal(key, (seq_len, batch, d_model), dtype=jnp.float32)

    pe2d = make_pe_table(d_model, max_len)            # (max_len, d_model), float32
    ref = x + pe2d[:seq_len][:, None, :]

    # Eval mode: dropout is identity -> must match the reference exactly.
    y_eval = jax.block_until_ready(
        positional_encoding(x, pe2d, dropout_p=dropout_p, training=False))
    assert y_eval.shape == (seq_len, batch, d_model)
    assert jnp.allclose(y_eval, ref, atol=1e-6, rtol=1e-6), "eval-mode mismatch"

    # Training mode: inverted dropout with a deterministic in-kernel mask.
    y_train = jax.block_until_ready(
        positional_encoding(x, pe2d, dropout_p=dropout_p, training=True, seed=42))
    assert y_train.shape == (seq_len, batch, d_model)
    scaled_ref = ref / (1.0 - dropout_p)
    kept = jnp.isclose(y_train, scaled_ref, atol=1e-5, rtol=1e-5)
    dropped = y_train == 0.0
    assert bool(jnp.all(kept | dropped)), "train-mode dropout semantics mismatch"
    keep_frac = float(jnp.mean(kept.astype(jnp.float32)))
    assert 0.7 < keep_frac <= 1.0, f"unexpected keep fraction {keep_frac}"

    # bf16 input path (bf16 compute, eval mode) -- exercises the low-precision branch.
    x_bf = x.astype(jnp.bfloat16)
    y_bf = jax.block_until_ready(
        positional_encoding(x_bf, pe2d, dropout_p=dropout_p, training=False))
    ref_bf = x_bf + pe2d[:seq_len][:, None, :].astype(jnp.bfloat16)
    assert y_bf.dtype == jnp.bfloat16 and y_bf.shape == (seq_len, batch, d_model)
    assert jnp.allclose(y_bf.astype(jnp.float32), ref_bf.astype(jnp.float32),
                        atol=5e-2, rtol=5e-2), "bf16-mode mismatch"

    print("KERNEL_OK")
</pallas_src>

<mosaic_0001>
module attributes {stable_mosaic.version = 11 : i64} {
  func.func @_pe_kernel(%arg0: i32, %arg1: memref<1xi32, #tpu.memory_space<smem>>, %arg2: memref<8x64xf32, #tpu.memory_space<vmem>>, %arg3: memref<8x32xf32, #tpu.memory_space<vmem>>, %arg4: memref<8x64xf32, #tpu.memory_space<vmem>>) attributes {dimension_semantics = [#tpu.dimension_semantics<parallel>], iteration_bounds = array<i64: 1>, scalar_prefetch = 0 : i64, scratch_operands = 0 : i64, tpu.core_type = #tpu.core_type<tc>, window_params = [{transform_indices = @transform_0, window_bounds = array<i64: 1>}, {transform_indices = @transform_1, window_bounds = array<i64: 8, 64>}, {transform_indices = @transform_2, window_bounds = array<i64: 8, 32>}, {transform_indices = @transform_3, window_bounds = array<i64: 8, 64>}]} {
    %c0 = arith.constant 0 : index
    %c0_0 = arith.constant 0 : index
    %0 = vector.load %arg3[%c0, %c0_0] : memref<8x32xf32, #tpu.memory_space<vmem>>, vector<8x32xf32>
    %1 = tpu.concatenate %0, %0 in 1 : vector<8x32xf32>, vector<8x32xf32> -> vector<8x64xf32>
    %c0_1 = arith.constant 0 : index
    %c0_2 = arith.constant 0 : index
    %2 = vector.load %arg2[%c0_1, %c0_2] : memref<8x64xf32, #tpu.memory_space<vmem>>, vector<8x64xf32>
    %3 = arith.addf %2, %1 : vector<8x64xf32>
    %c0_3 = arith.constant 0 : index
    %c0_4 = arith.constant 0 : index
    %4 = vector.load %arg4[%c0_3, %c0_4] : memref<8x64xf32, #tpu.memory_space<vmem>>, vector<8x64xf32>
    tpu.vector_store %arg4[%c0_3, %c0_4], %3 {strides = array<i32>} : memref<8x64xf32, #tpu.memory_space<vmem>>, vector<8x64xf32>,
    return
  }
  func.func @transform_0(%arg0: i32) -> i32 {
    %c0_i32 = arith.constant 0 : i32
    %c0_i32_0 = arith.constant 0 : i32
    return %c0_i32 : i32
  }
  func.func @transform_1(%arg0: i32) -> (i32, i32) {
    %c0_i32 = arith.constant 0 : i32
    %c0_i32_0 = arith.constant 0 : i32
    return %arg0, %c0_i32 : i32, i32
  }
  func.func @transform_2(%arg0: i32) -> (i32, i32) {
    %c0_i32 = arith.constant 0 : i32
    %c0_i32_0 = arith.constant 0 : i32
    return %arg0, %c0_i32 : i32, i32
  }
  func.func @transform_3(%arg0: i32) -> (i32, i32) {
    %c0_i32 = arith.constant 0 : i32
    %c0_i32_0 = arith.constant 0 : i32
    return %arg0, %c0_i32 : i32, i32
  }
}

</mosaic_0001>

<llo_original>
// kernel: tpu_custom_call.1
$region0: #{tpu_custom_call.1}
  #allocation0 [shape = 'u32[]', space=smem, size = 0x4, offset = 0x4, fixed_abs, tag = 'smem constant byte address 0x4 - core index']
  #allocation1 [shape = 'u32[72,128]{1,0:T(1,128)}', space=vmem, size = 0x9000, scoped, tag = 'internal scratch']
  #allocation2 [shape = 's32[1]{0:T(128)S(6)}', space=smem, size = 0x200, scoped, tag = 'scoped memory for tpu_custom_call.1']
  %s0 = inlined_call_operand.<no memory space> [shape: s32[1], index: 0, kind: input, shape index: {}]
  %s1 = inlined_call_operand.hbm [shape: f32[8,64], index: 1, kind: input, shape index: {}]
  %s2 = inlined_call_operand.hbm [shape: f32[8,32], index: 2, kind: input, shape index: {}]
  %s3 = inlined_call_operand.hbm [shape: f32[8,64], index: 3, kind: output, shape index: {}]
  %s4 = sld [smem:[#allocation0]]
  $region30: #{tpu_custom_call.1} parent=0
    _
  %s6 = ssub.s32 1, %s4
  %s7 = scalar_select 0, %s6, %s4
  %8 = sst [smem:[#allocation2]] %s0
  $region1: #{tpu_custom_call.1} parent=0
    #allocation3 [shape = 'u8[4096]{0}', space=vmem, size = 0x1000, scoped, tag = 'input window, operand 1, single buffered']
    #allocation4 [shape = 's32[1]{0}', space=sflag, size = 0x4, scoped, tag = 'scoped memory for tpu_custom_call.1']
    #allocation5 [shape = 's32[1]{0}', space=sflag, size = 0x4, scoped, tag = 'scoped memory for tpu_custom_call.1']
    #allocation6 [shape = 'u8[4096]{0}', space=vmem, size = 0x1000, scoped, tag = 'input window, operand 2, single buffered']
    #allocation7 [shape = 's32[1]{0}', space=sflag, size = 0x4, scoped, tag = 'scoped memory for tpu_custom_call.1']
    #allocation8 [shape = 'u8[4096]{0}', space=vmem, size = 0x1000, scoped, tag = 'output window, operand 0, single buffered']
    %9 = vsyncpa [#allocation4], 0
    %10 = vsyncpa [#allocation7], 0
    %11 = vsyncpa [#allocation5], 0
    // Predicated region
    $region2: #{tpu_custom_call.1} parent=1 // pred_check
      _
    $region3: #{tpu_custom_call.1} parent=1 // pred_check_branch
      %13 = sbr.rel (0) target = $region5
    $region4: #{tpu_custom_call.1} parent=1 // pred_region
      _
    $region5: #{tpu_custom_call.1} parent=1 // pred_fallthru
      _
    // Predicated region
    $region6: #{tpu_custom_call.1} parent=1 // pred_check
      _
    $region7: #{tpu_custom_call.1} parent=1 // pred_check_branch
      %15 = sbr.rel (0) target = $region9
    $region8: #{tpu_custom_call.1} parent=1 // pred_region
      %17 = vsyncadd [#allocation4], 0
      %s19 = sshll.u32 %s1, 4
      %s20 = int_to_ptr.hbm [resolvable:$true] %s19
      %s21 = sshll.u32 [#allocation3], 4
      %s22 = int_to_ptr.vmem [resolvable:$true] %s21
      %24 = dma.hbm_to_vmem [thread:$0]  %s20, 128, %s22, [#allocation4]
    $region9: #{tpu_custom_call.1} parent=1 // pred_fallthru
      _
    // Predicated region
    $region10: #{tpu_custom_call.1} parent=1 // pred_check
      _
    $region11: #{tpu_custom_call.1} parent=1 // pred_check_branch
      %26 = sbr.rel (0) target = $region13
    $region12: #{tpu_custom_call.1} parent=1 // pred_region
      %28 = vsyncadd [#allocation7], 0
      %s30 = sshll.u32 %s2, 4
      %s31 = int_to_ptr.hbm [resolvable:$true] %s30
      %s32 = sshll.u32 [#allocation6], 4
      %s33 = int_to_ptr.vmem [resolvable:$true] %s32
      %35 = dma.hbm_to_vmem [thread:$0]  %s31, 128, %s33, [#allocation7]
    $region13: #{tpu_custom_call.1} parent=1 // pred_fallthru
      _
    // Predicated region
    $region14: #{tpu_custom_call.1} parent=1 // pred_check
      _
    $region15: #{tpu_custom_call.1} parent=1 // pred_check_branch
      %37 = sbr.rel (0) target = $region17
    $region16: #{tpu_custom_call.1} parent=1 // pred_region
      %39 = dma.done [#allocation4], 128
    $region17: #{tpu_custom_call.1} parent=1 // pred_fallthru
      _
    // Predicated region
    $region18: #{tpu_custom_call.1} parent=1 // pred_check
      _
    $region19: #{tpu_custom_call.1} parent=1 // pred_check_branch
      %41 = sbr.rel (0) target = $region21
    $region20: #{tpu_custom_call.1} parent=1 // pred_region
      %43 = dma.done [#allocation7], 128
    $region21: #{tpu_custom_call.1} parent=1 // pred_fallthru
      _
    %v44 = vld [vmem:[#allocation6] sm:$0xff]
    %46 = vrot.lane.b32.xlu0 %v44, 32
    %v47 = vpop.permute.xlu0 %46
    %vm49 = vcmask 261120
    %v50 = vsel %vm49, %v44, %v47
    %v51 = vld [vmem:[#allocation3] sm:$0xff]
    %v52 = vadd.f32 %v51, %v50
    %vm53 = vcmask 523264
    %54 = vst.msk [vmem:[#allocation8] sm:$0xff] %vm53, %v52
    // Predicated region
    $region22: #{tpu_custom_call.1} parent=1 // pred_check
      _
    $region23: #{tpu_custom_call.1} parent=1 // pred_check_branch
      %56 = sbr.rel (0) target = $region25
    $region24: #{tpu_custom_call.1} parent=1 // pred_region
      %58 = vsyncadd [#allocation5], 0
      %s60 = sshll.u32 [#allocation8], 4
      %s61 = int_to_ptr.vmem [resolvable:$true] %s60
      %s62 = sshll.u32 %s3, 4
      %s63 = int_to_ptr.hbm [resolvable:$true] %s62
      %65 = dma.vmem_to_hbm [thread:$0]  %s61, 128, %s63, [#allocation5]
    $region25: #{tpu_custom_call.1} parent=1 // pred_fallthru
      _
    // Predicated region
    $region26: #{tpu_custom_call.1} parent=1 // pred_check
      _
    $region27: #{tpu_custom_call.1} parent=1 // pred_check_branch
      %67 = sbr.rel (0) target = $region29
    $region28: #{tpu_custom_call.1} parent=1 // pred_region
      %69 = dma.done [#allocation5], 128
    $region29: #{tpu_custom_call.1} parent=1 // pred_fallthru
      _
    %70 = vsyncpa [#allocation4], 1
    %71 = vsyncpa [#allocation7], 1
    %72 = vsyncpa [#allocation5], 1

</llo_original>
